<compile_context>
chip_gen: v5e
topology: v5e:2x2
jax: 0.10.0
libtpu: 0.0.40
codegen_flags: <defaults>
</compile_context>

<pallas_src>
import jax
import jax.numpy as jnp
from jax.experimental import pallas as pl
from jax.experimental.pallas import tpu as pltpu


def _implicit_a_kernel(x_ref, b_ref, o_ref):
    # x_ref: (TR, TL) activation tile.
    # b_ref: (TR, 1) per-row bias (layout A) or (1, TL) per-lane bias row
    #        (layout B); jnp broadcasting covers both.  The add promotes like
    #        PyTorch (bf16 x + f32 implicit -> f32 out).
    o_ref[...] = (x_ref[...] + b_ref[...]).astype(o_ref.dtype)


def _round_down(v, m):
    return (v // m) * m


def _vmem_capacity_bytes():
    try:
        cap = getattr(pltpu.get_tpu_info(), "vmem_capacity_bytes", None)
        if cap:
            return int(cap)
    except Exception:
        pass
    return 64 * 1024 * 1024  # conservative fallback: smallest current gen (v7x per-TC)


def implicit_a_forward(x_nchw, implicit, *, donate_x=False):
    """ImplicitA.forward: implicit.expand_as(x) + x (x NCHW, implicit (1,C,1,1))."""
    N, C, H, W = x_nchw.shape
    assert implicit.shape == (1, C, 1, 1), implicit.shape

    HW = H * W
    out_dtype = jnp.result_type(x_nchw.dtype, implicit.dtype)
    x_bytes = jnp.dtype(x_nchw.dtype).itemsize
    o_bytes = jnp.dtype(out_dtype).itemsize
    per_elem = x_bytes + o_bytes  # HBM bytes per element (read x + write out)

    # ---- Layout: keep the flatten contiguous (free) and the last dim lane-dense.
    if HW % 128 == 0 or C * HW < 128:
        # Layout A: (N*C, H*W), per-row (= per (n,c)) bias, broadcast over lanes.
        R, L = N * C, HW
        xf = x_nchw.reshape(R, L)
        bias = jnp.broadcast_to(implicit.reshape(1, C), (N, C)).reshape(R, 1)
        bias_is_row = False
    else:
        # Layout B: (N, C*H*W); bias is a single (1, C*H*W) row broadcast over
        # sublanes.  Lane-dense even when H*W isn't a multiple of 128
        # (e.g. 7x7, 20x20), avoiding masked vst.msk partial stores.
        R, L = N, C * HW
        xf = x_nchw.reshape(R, L)
        bias = jnp.broadcast_to(implicit.reshape(C, 1), (C, HW)).reshape(1, L)
        bias_is_row = True

    # ---- Generation-aware block budget (combined in+out bytes of one tile).
    vmem_phys = _vmem_capacity_bytes()
    block_budget = min(8 * 1024 * 1024, max(2 * 1024 * 1024, vmem_phys // 12))

    # Lane tile: multiple of 128 whenever possible, capped so >=8 rows fit.
    if L < 128:
        tl = L  # full extent; masking unavoidable at this size
    else:
        tl_cap = max(128, _round_down(block_budget // (8 * per_elem), 128))
        tl = min(L if L % 128 == 0 else _round_down(L, 128), tl_cap)

    # Row tile: multiple of 32 (keeps native sublane packing for bf16/int8 too),
    # sized to fill the block budget.
    rows_fit = max(1, block_budget // max(tl * per_elem, 1))
    if rows_fit >= R:
        tr = R
    elif rows_fit >= 32:
        tr = _round_down(rows_fit, 32)
    elif rows_fit >= 8:
        tr = _round_down(rows_fit, 8)
    else:
        tr = 8

    # Megacore / v7x: ensure at least two grid steps so both TensorCores get
    # work (both axes are "parallel").
    if pl.cdiv(R, tr) * pl.cdiv(L, tl) < 2 and R >= 16:
        half = _round_down(R // 2, 32) or _round_down(R // 2, 8)
        if half >= 8:
            tr = half

    grid = (pl.cdiv(R, tr), pl.cdiv(L, tl))

    # VMEM limit: in+out blocks double-buffered, plus bias + compiler slack.
    block_bytes = tr * tl * per_elem
    vmem_limit = int(min(vmem_phys * 0.75,
                         2 * block_bytes + bias.size * o_bytes + 8 * 1024 * 1024))

    bias_spec = (pl.BlockSpec((1, tl), lambda i, j: (0, j)) if bias_is_row
                 else pl.BlockSpec((tr, 1), lambda i, j: (i, 0)))

    # Optional buffer donation: in/out index maps match, so the output can
    # reuse x's HBM buffer when the caller no longer needs x.
    io_aliases = {0: 0} if (donate_x and x_nchw.dtype == out_dtype) else {}

    cost = pl.CostEstimate(
        flops=R * L,
        transcendentals=0,
        bytes_accessed=R * L * per_elem + bias.size * jnp.dtype(bias.dtype).itemsize,
    )

    out = pl.pallas_call(
        _implicit_a_kernel,
        out_shape=jax.ShapeDtypeStruct((R, L), out_dtype),
        grid=grid,
        in_specs=[
            pl.BlockSpec((tr, tl), lambda i, j: (i, j)),
            bias_spec,
        ],
        out_specs=pl.BlockSpec((tr, tl), lambda i, j: (i, j)),
        input_output_aliases=io_aliases,
        cost_estimate=cost,
        compiler_params=pltpu.CompilerParams(
            dimension_semantics=("parallel", "parallel"),
            vmem_limit_bytes=vmem_limit),
    )(xf, bias)

    return out.reshape(N, C, H, W)


if __name__ == "__main__":
    key = jax.random.PRNGKey(0)
    kx, kp = jax.random.split(key)

    N, C, H, W = 2, 4, 16, 16
    x = jax.random.normal(kx, (N, C, H, W), jnp.float32)            # NCHW, like PyTorch
    # nn.init.normal_(self.implicit, std=0.02)
    implicit = 0.02 * jax.random.normal(kp, (1, C, 1, 1), jnp.float32)

    out = jax.block_until_ready(implicit_a_forward(x, implicit))

    # Pure-JAX reference: implicit.expand_as(x) + x == broadcast add.
    ref = jax.block_until_ready(x + implicit)

    assert out.shape == (N, C, H, W), out.shape
    assert out.dtype == ref.dtype, (out.dtype, ref.dtype)
    max_err = float(jnp.max(jnp.abs(out - ref)))
    assert jnp.allclose(out, ref, atol=1e-6, rtol=1e-6), max_err

    print("KERNEL_OK")
</pallas_src>

<mosaic_0001>
module attributes {stable_mosaic.version = 11 : i64} {
  func.func @_implicit_a_kernel(%arg0: i32, %arg1: i32, %arg2: memref<8x256xf32, #tpu.memory_space<vmem>>, %arg3: memref<8x1xf32, #tpu.memory_space<vmem>>, %arg4: memref<8x256xf32, #tpu.memory_space<vmem>>) attributes {dimension_semantics = [#tpu.dimension_semantics<parallel>, #tpu.dimension_semantics<parallel>], iteration_bounds = array<i64: 1, 1>, scalar_prefetch = 0 : i64, scratch_operands = 0 : i64, tpu.core_type = #tpu.core_type<tc>, window_params = [{transform_indices = @transform_0, window_bounds = array<i64: 8, 256>}, {transform_indices = @transform_1, window_bounds = array<i64: 8, 1>}, {transform_indices = @transform_2, window_bounds = array<i64: 8, 256>}]} {
    %c0 = arith.constant 0 : index
    %c0_0 = arith.constant 0 : index
    %0 = vector.load %arg2[%c0, %c0_0] : memref<8x256xf32, #tpu.memory_space<vmem>>, vector<8x256xf32>
    %c0_1 = arith.constant 0 : index
    %c0_2 = arith.constant 0 : index
    %1 = vector.load %arg3[%c0_1, %c0_2] : memref<8x1xf32, #tpu.memory_space<vmem>>, vector<8x1xf32>
    %2 = vector.broadcast %1 : vector<8x1xf32> to vector<8x256xf32>
    %3 = arith.addf %0, %2 : vector<8x256xf32>
    %c0_3 = arith.constant 0 : index
    %c0_4 = arith.constant 0 : index
    %4 = vector.load %arg4[%c0_3, %c0_4] : memref<8x256xf32, #tpu.memory_space<vmem>>, vector<8x256xf32>
    tpu.vector_store %arg4[%c0_3, %c0_4], %3 {strides = array<i32>} : memref<8x256xf32, #tpu.memory_space<vmem>>, vector<8x256xf32>,
    return
  }
  func.func @transform_0(%arg0: i32, %arg1: i32) -> (i32, i32) {
    %c0_i32 = arith.constant 0 : i32
    return %arg0, %arg1 : i32, i32
  }
  func.func @transform_1(%arg0: i32, %arg1: i32) -> (i32, i32) {
    %c0_i32 = arith.constant 0 : i32
    %c0_i32_0 = arith.constant 0 : i32
    return %arg0, %c0_i32 : i32, i32
  }
  func.func @transform_2(%arg0: i32, %arg1: i32) -> (i32, i32) {
    %c0_i32 = arith.constant 0 : i32
    return %arg0, %arg1 : i32, i32
  }
}

</mosaic_0001>

<llo_original>
// kernel: tpu_custom_call.1
$region0: #{tpu_custom_call.1}
  #allocation0 [shape = 'u32[]', space=smem, size = 0x4, offset = 0x4, fixed_abs, tag = 'smem constant byte address 0x4 - core index']
  #allocation1 [shape = 'u32[72,128]{1,0:T(1,128)}', space=vmem, size = 0x9000, scoped, tag = 'internal scratch']
  %s0 = inlined_call_operand.hbm [shape: f32[8,256], index: 0, kind: input, shape index: {}]
  %s1 = inlined_call_operand.vmem [shape: f32[8,1], index: 1, kind: input, shape index: {}]
  %s2 = inlined_call_operand.hbm [shape: f32[8,256], index: 2, kind: output, shape index: {}]
  %s3 = sld [smem:[#allocation0]]
  $region22: #{tpu_custom_call.1} parent=0
    _
  %s5 = ssub.s32 1, %s3
  %s6 = scalar_select 0, %s5, %s3
  $region1: #{tpu_custom_call.1} parent=0
    #allocation2 [shape = 'u8[8192]{0}', space=vmem, size = 0x2000, scoped, tag = 'input window, operand 0, single buffered']
    #allocation3 [shape = 's32[1]{0}', space=sflag, size = 0x4, scoped, tag = 'scoped memory for tpu_custom_call.1']
    #allocation4 [shape = 's32[1]{0}', space=sflag, size = 0x4, scoped, tag = 'scoped memory for tpu_custom_call.1']
    #allocation5 [shape = 'u8[8192]{0}', space=vmem, size = 0x2000, scoped, tag = 'output window, operand 0, single buffered']
    %7 = vsyncpa [#allocation3], 0
    %8 = vsyncpa [#allocation4], 0
    // Predicated region
    $region2: #{tpu_custom_call.1} parent=1 // pred_check
      _
    $region3: #{tpu_custom_call.1} parent=1 // pred_check_branch
      %10 = sbr.rel (0) target = $region5
    $region4: #{tpu_custom_call.1} parent=1 // pred_region
      %12 = vsyncadd [#allocation3], 0
      %s14 = sshll.u32 %s0, 4
      %s15 = int_to_ptr.hbm [resolvable:$true] %s14
      %s16 = sshll.u32 [#allocation2], 4
      %s17 = int_to_ptr.vmem [resolvable:$true] %s16
      %19 = dma.hbm_to_vmem [thread:$0]  %s15, 256, %s17, [#allocation3]
    $region5: #{tpu_custom_call.1} parent=1 // pred_fallthru
      _
    // Predicated region
    $region6: #{tpu_custom_call.1} parent=1 // pred_check
      _
    $region7: #{tpu_custom_call.1} parent=1 // pred_check_branch
      %21 = sbr.rel (0) target = $region9
    $region8: #{tpu_custom_call.1} parent=1 // pred_region
      _
    $region9: #{tpu_custom_call.1} parent=1 // pred_fallthru
      _
    // Predicated region
    $region10: #{tpu_custom_call.1} parent=1 // pred_check
      _
    $region11: #{tpu_custom_call.1} parent=1 // pred_check_branch
      %23 = sbr.rel (0) target = $region13
    $region12: #{tpu_custom_call.1} parent=1 // pred_region
      %25 = dma.done [#allocation3], 256
    $region13: #{tpu_custom_call.1} parent=1 // pred_fallthru
      _
    %v26 = vld [vmem:[#allocation2] sm:$0xff]
    %v27 = vld [vmem:[#allocation2 + $0x8] sm:$0xff]
    %v28 = vld [vmem:[%s1] sm:$0xff]
    %30 = vset.pattern.permute.xlu0 0
    %31 = vperm.xlu0 %30, %v28
    %v32 = vpop.permute.xlu0 %31
    %v34 = vadd.f32 %v26, %v32
    %v35 = vadd.f32 %v27, %v32
    %36 = vst [vmem:[#allocation5] sm:$0xff] %v34
    %37 = vst [vmem:[#allocation5 + $0x8] sm:$0xff] %v35
    // Predicated region
    $region14: #{tpu_custom_call.1} parent=1 // pred_check
      _
    $region15: #{tpu_custom_call.1} parent=1 // pred_check_branch
      %39 = sbr.rel (0) target = $region17
    $region16: #{tpu_custom_call.1} parent=1 // pred_region
      %41 = vsyncadd [#allocation4], 0
      %s43 = sshll.u32 [#allocation5], 4
      %s44 = int_to_ptr.vmem [resolvable:$true] %s43
      %s45 = sshll.u32 %s2, 4
      %s46 = int_to_ptr.hbm [resolvable:$true] %s45
      %48 = dma.vmem_to_hbm [thread:$0]  %s44, 256, %s46, [#allocation4]
    $region17: #{tpu_custom_call.1} parent=1 // pred_fallthru
      _
    // Predicated region
    $region18: #{tpu_custom_call.1} parent=1 // pred_check
      _
    $region19: #{tpu_custom_call.1} parent=1 // pred_check_branch
      %50 = sbr.rel (0) target = $region21
    $region20: #{tpu_custom_call.1} parent=1 // pred_region
      %52 = dma.done [#allocation4], 256
    $region21: #{tpu_custom_call.1} parent=1 // pred_fallthru
      _
    %53 = vsyncpa [#allocation3], 1
    %54 = vsyncpa [#allocation4], 1

</llo_original>
